<compile_context>
chip_gen: v5e
topology: v5e:2x2
jax: 0.10.0
libtpu: 0.0.40
codegen_flags: <defaults>
</compile_context>

<pallas_src>
import functools

import jax
import jax.numpy as jnp
from jax import lax
from jax.experimental import pallas as pl
from jax.experimental.pallas import tpu as pltpu

LN_EPS = 1e-5  # nn.LayerNorm default


def _layer_norm(y, gamma, beta):
    """One-pass LayerNorm over the last axis of f32 `y`.

    Uses sum / sum-of-squares so only two VALU passes touch the (rows, Cout)
    tile (vs three for the centered two-pass form); rsqrt goes to the EUP.
    """
    inv_n = 1.0 / y.shape[-1]
    s1 = jnp.sum(y, axis=-1, keepdims=True)
    s2 = jnp.sum(y * y, axis=-1, keepdims=True)
    mean = s1 * inv_n
    var = jnp.maximum(s2 * inv_n - mean * mean, 0.0)
    return (y - mean) * lax.rsqrt(var + LN_EPS) * gamma + beta


def _merge_ln_kernel_2d(x_ref, w_ref, g_ref, b_ref, o_ref):
    """Fast path: LayerNorm(merged @ W) with a layout-free rows collapse.

    x_ref: (bi, 2, W2, 2C)  bi merged image rows; dim 1 = even/odd source row
    w_ref: (2, 2C, Cout)    permuted reduction weight (see wrapper)
    g_ref: (1, Cout)        LayerNorm gamma (f32)
    b_ref: (1, Cout)        LayerNorm beta  (f32)
    o_ref: (bi * W2, Cout)  output tile

    The wrapper only selects this kernel when W2 % sublane(input dtype) == 0,
    so the (bi, W2) -> rows reshape below is layout-preserving (no relayout).
    """
    bi, _, w2, k2 = x_ref.shape
    rows = bi * w2
    we = w_ref[0]                       # (2C, Cout), matmul dtype
    wo = w_ref[1]
    mm_dtype = we.dtype

    # Ref-view slab loads (never materializes the full 4-D tile value).
    xe = x_ref[:, 0, :, :].reshape(rows, k2).astype(mm_dtype)
    xo = x_ref[:, 1, :, :].reshape(rows, k2).astype(mm_dtype)

    # Linear(4C -> Cout) as two K=2C MXU matmuls accumulated in f32.
    y = jnp.dot(xe, we, preferred_element_type=jnp.float32)
    y = y + jnp.dot(xo, wo, preferred_element_type=jnp.float32)

    o_ref[...] = _layer_norm(y, g_ref[...], b_ref[...]).astype(o_ref.dtype)


def _merge_ln_kernel_rows(x_ref, w_ref, g_ref, b_ref, o_ref):
    """Relayout-free fallback for merged widths that are not sublane-aligned
    (real Swin grids: W2 = 28 / 14 / 7).

    Blocks stay 3-D: for each merged image row r we run the two
    (W2, 2C) x (2C, Cout) matmuls and store straight into o_ref[r], so no
    cross-padded-group reshape (and no per-tile VMEM relayout) ever happens.
    MXU waste is only the W2 -> sublane padding (~12.5%) and the kernel is
    HBM-bound anyway.

    x_ref: (bi, 2, W2, 2C); o_ref: (bi, W2, Cout)
    # TODO(synk): per-row matmuls may re-stage the MXU RHS each iteration; if
    # bundles show that, unroll by 2-4 or split per-dh loops to keep RHS hot.
    """
    bi = x_ref.shape[0]
    we = w_ref[0]
    wo = w_ref[1]
    mm_dtype = we.dtype
    gamma = g_ref[...]
    beta = b_ref[...]

    def body(r, carry):
        row = x_ref[r]                              # (2, W2, 2C)
        xe = row[0].astype(mm_dtype)
        xo = row[1].astype(mm_dtype)
        y = jnp.dot(xe, we, preferred_element_type=jnp.float32)
        y = y + jnp.dot(xo, wo, preferred_element_type=jnp.float32)
        o_ref[r] = _layer_norm(y, gamma, beta).astype(o_ref.dtype)
        return carry

    lax.fori_loop(0, bi, body, 0)


def _pick_row_block(n_rows, bytes_per_row, *, budget_bytes, min_grid=4):
    """Pick the merged-image-row block size `bi`.

    Largest divisor of n_rows whose double-buffered working set fits the
    budget, while keeping >= min_grid grid steps (>= 2 per v7x TensorCore) and
    preferring an even grid (TC load balance).  Never collapses to grid=1 when
    the input has >= 2 rows.
    """
    cap = max(1, budget_bytes // max(1, bytes_per_row))
    if n_rows >= min_grid:
        cap = min(cap, n_rows // min_grid)
    elif n_rows >= 2:
        cap = min(cap, n_rows // 2)
    cap = max(1, min(cap, n_rows))
    divisors = [d for d in range(1, cap + 1) if n_rows % d == 0]
    d_max = max(divisors)
    # Only consider tiles within 2x of the largest feasible one, then prefer
    # an even grid, then the largest tile.
    cands = [d for d in divisors if 2 * d > d_max]
    return max(cands, key=lambda d: (((n_rows // d) % 2) == 0, d))
    # TODO(synk): if n_rows is prime and large, allow a non-divisor bi with a
    # masked last block instead of falling back to bi=1.


def patch_merge_forward(tokens, patch_grid_hw, params, *,
                        matmul_dtype=jnp.bfloat16, out_dtype=None):
    """JAX/Pallas equivalent of PatchMerge.forward.

    tokens: (B, N, C); patch_grid_hw: (H, W) Python ints, N == H * W.
    params: {'w': (4C, Cout) (transposed nn.Linear weight),
             'gamma': (Cout,), 'beta': (Cout,)}.
    Returns (merged_tokens (B, N//4, Cout), (H//2, W//2)).
    """
    H, W = patch_grid_hw
    B, N, C = tokens.shape
    assert N == H * W, "tokens must form an HxW patch grid"
    assert H % 2 == 0 and W % 2 == 0, "patch grid must be even to 2x2-merge"
    H2, W2 = H // 2, W // 2
    K = 4 * C
    Cout = params["w"].shape[1]
    assert params["w"].shape[0] == K
    if out_dtype is None:
        out_dtype = tokens.dtype

    # Free view (no HBM copy): x5[r, dh, j, dw*C + c] == img[b, 2i+dh, 2j+dw, c]
    # with r = b*H2 + i.
    x5 = tokens.reshape(B * H2, 2, W2, 2 * C)

    # Fold the [tl, bl, tr, br] concat order into the weight rows:
    #   even source row (dh=0) carries [tl | tr] -> W rows [0:C] + [2C:3C]
    #   odd  source row (dh=1) carries [bl | br] -> W rows [C:2C] + [3C:4C]
    w = params["w"]
    w_perm = jnp.stack(
        [jnp.concatenate([w[0 * C:1 * C], w[2 * C:3 * C]], axis=0),
         jnp.concatenate([w[1 * C:2 * C], w[3 * C:4 * C]], axis=0)],
        axis=0).astype(matmul_dtype)                      # (2, 2C, Cout)
    gamma = params["gamma"].reshape(1, Cout).astype(jnp.float32)
    beta = params["beta"].reshape(1, Cout).astype(jnp.float32)

    in_size = jnp.dtype(tokens.dtype).itemsize
    out_size = jnp.dtype(out_dtype).itemsize
    mm_size = jnp.dtype(matmul_dtype).itemsize
    sublane_in = max(8, 32 // in_size)      # 8 f32, 16 bf16, 32 int8/fp8
    collapse_ok = (W2 % sublane_in == 0)

    n_rows = B * H2                          # merged-image rows (grid unit)
    M = n_rows * W2                          # total merged tokens

    # Per-merged-row VMEM cost: double-buffered in/out blocks + in-kernel
    # temporaries (casted slabs, f32 y, one LN temporary), with 30% headroom.
    bytes_per_row = int(1.3 * (
        2 * (2 * W2 * 2 * C) * in_size       # input block, double-buffered
        + 2 * (W2 * Cout) * out_size         # output block, double-buffered
        + 2 * (W2 * 2 * C) * mm_size         # casted xe/xo temporaries
        + 2 * (W2 * Cout) * 4))              # f32 y + LN temporary
    weight_bytes = 2 * (2 * C) * Cout * mm_size + 2 * Cout * 4   # single-buffered
    budget = max((36 << 20) - weight_bytes - (1 << 20), 4 << 20)
    bi = _pick_row_block(n_rows, bytes_per_row, budget_bytes=budget, min_grid=4)
    grid = (n_rows // bi,)
    tile_rows = bi * W2

    est_vmem = bi * bytes_per_row + weight_bytes + (1 << 20)
    vmem_limit = int(min(max(est_vmem, 32 << 20), 64 << 20))

    cost = pl.CostEstimate(
        flops=2 * M * K * Cout + 8 * M * Cout,
        transcendentals=M,
        bytes_accessed=(tokens.size * in_size + w_perm.size * mm_size
                        + 2 * Cout * 4 + M * Cout * out_size))

    # Grid-invariant operands: fetched once, single-buffered (halves their
    # resident VMEM footprint vs the default double buffering).
    const_specs = [
        pl.BlockSpec((2, 2 * C, Cout), lambda i: (0, 0, 0),
                     pipeline_mode=pl.Buffered(1)),
        pl.BlockSpec((1, Cout), lambda i: (0, 0),
                     pipeline_mode=pl.Buffered(1)),
        pl.BlockSpec((1, Cout), lambda i: (0, 0),
                     pipeline_mode=pl.Buffered(1)),
    ]
    cparams = pltpu.CompilerParams(dimension_semantics=("parallel",),
                                   vmem_limit_bytes=vmem_limit)
    x_spec = pl.BlockSpec((bi, 2, W2, 2 * C), lambda i: (i, 0, 0, 0))

    if collapse_ok:
        # NOTE: for tiny Cout (<128) output stores are lane-masked (test-only
        # shapes); real Swin stages (Cout >= 192) are unaffected.
        out2d = pl.pallas_call(
            _merge_ln_kernel_2d,
            out_shape=jax.ShapeDtypeStruct((M, Cout), out_dtype),
            grid=grid,
            in_specs=[x_spec] + const_specs,
            out_specs=pl.BlockSpec((tile_rows, Cout), lambda i: (i, 0)),
            compiler_params=cparams,
            cost_estimate=cost,
        )(x5, w_perm, gamma, beta)
        merged = out2d.reshape(B, N // 4, Cout)
    else:
        out3d = pl.pallas_call(
            _merge_ln_kernel_rows,
            out_shape=jax.ShapeDtypeStruct((n_rows, W2, Cout), out_dtype),
            grid=grid,
            in_specs=[x_spec] + const_specs,
            out_specs=pl.BlockSpec((bi, W2, Cout), lambda i: (i, 0, 0)),
            compiler_params=cparams,
            cost_estimate=cost,
        )(x5, w_perm, gamma, beta)
        merged = out3d.reshape(B, N // 4, Cout)

    return merged, (H2, W2)


def _reference_forward(tokens, patch_grid_hw, params, matmul_dtype=None):
    """Pure-JAX reference mirroring the PyTorch module."""
    H, W = patch_grid_hw
    B, N, C = tokens.shape
    img = tokens.reshape(B, H, W, C)
    merged = jnp.concatenate(
        [img[:, 0::2, 0::2, :], img[:, 1::2, 0::2, :],
         img[:, 0::2, 1::2, :], img[:, 1::2, 1::2, :]], axis=-1)
    x = merged.reshape(B, N // 4, 4 * C)
    w = params["w"]
    if matmul_dtype is not None:
        x = x.astype(matmul_dtype)
        w = w.astype(matmul_dtype)
    y = jnp.einsum("bnk,kc->bnc", x, w, preferred_element_type=jnp.float32)
    mean = jnp.mean(y, axis=-1, keepdims=True)
    var = jnp.mean((y - mean) ** 2, axis=-1, keepdims=True)
    y = (y - mean) / jnp.sqrt(var + LN_EPS)
    return (y * params["gamma"] + params["beta"]).astype(tokens.dtype)


if __name__ == "__main__":
    def run_case(B, H, W, C, note):
        C_OUT = 2 * C
        N = H * W
        key = jax.random.PRNGKey(0)
        k_tok, k_w = jax.random.split(key, 2)
        tokens = jax.random.normal(k_tok, (B, N, C), dtype=jnp.float32)
        params = {
            # PyTorch Linear stores (out, in); we store the transposed (in, out).
            "w": jax.random.normal(k_w, (4 * C, C_OUT), dtype=jnp.float32)
                 * (1.0 / (4 * C) ** 0.5),
            "gamma": jnp.ones((C_OUT,), dtype=jnp.float32),
            "beta": jnp.zeros((C_OUT,), dtype=jnp.float32),
        }
        fwd32 = jax.jit(functools.partial(
            patch_merge_forward, patch_grid_hw=(H, W), params=params,
            matmul_dtype=jnp.float32))
        out32, hw = fwd32(tokens)
        out32 = jax.block_until_ready(out32)
        assert out32.shape == (B, N // 4, C_OUT), (note, out32.shape)
        assert hw == (H // 2, W // 2), (note, hw)
        ref32 = _reference_forward(tokens, (H, W), params)
        err = float(jnp.max(jnp.abs(out32 - ref32)))
        assert err < 1e-4, f"{note}: f32 path mismatch vs reference: {err}"
        return tokens, params, ref32

    # Aligned fast path: W2 = 8 is a multiple of the f32 sublane tile.
    B, H, W, C = 2, 16, 16, 32
    tokens, params, ref32 = run_case(B, H, W, C, "aligned")

    # Default (bf16-matmul, f32-LN) path on the aligned case.
    fwd16 = jax.jit(functools.partial(
        patch_merge_forward, patch_grid_hw=(H, W), params=params))
    out16, _ = fwd16(tokens)
    out16 = jax.block_until_ready(out16)
    ref16 = _reference_forward(tokens, (H, W), params, matmul_dtype=jnp.bfloat16)
    err16 = float(jnp.max(jnp.abs(out16 - ref16)))
    assert err16 < 1e-3, f"bf16 path mismatch vs bf16 reference: {err16}"
    err16_vs32 = float(jnp.max(jnp.abs(out16 - ref32)))
    assert err16_vs32 < 8e-2, f"bf16 path too far from f32 reference: {err16_vs32}"

    # Misaligned merged width (W2 = 6): exercises the relayout-free 3-D path
    # used by real Swin grids (W2 = 28/14/7).
    run_case(2, 12, 12, 32, "misaligned")

    print("KERNEL_OK")
</pallas_src>

<mosaic_0001>
module attributes {stable_mosaic.version = 11 : i64} {
  func.func @_merge_ln_kernel_2d(%arg0: i32, %arg1: memref<4x2x8x64xf32, #tpu.memory_space<vmem>>, %arg2: memref<2x64x64xf32, #tpu.memory_space<vmem>>, %arg3: memref<1x64xf32, #tpu.memory_space<vmem>>, %arg4: memref<1x64xf32, #tpu.memory_space<vmem>>, %arg5: memref<32x64xf32, #tpu.memory_space<vmem>>) attributes {dimension_semantics = [#tpu.dimension_semantics<parallel>], iteration_bounds = array<i64: 4>, scalar_prefetch = 0 : i64, scratch_operands = 0 : i64, tpu.core_type = #tpu.core_type<tc>, window_params = [{transform_indices = @transform_0, window_bounds = array<i64: 4, 2, 8, 64>}, {pipeline_mode = #tpu.pipeline_mode<synchronous>, transform_indices = @transform_1, window_bounds = array<i64: 2, 64, 64>}, {pipeline_mode = #tpu.pipeline_mode<synchronous>, transform_indices = @transform_2, window_bounds = array<i64: 1, 64>}, {pipeline_mode = #tpu.pipeline_mode<synchronous>, transform_indices = @transform_3, window_bounds = array<i64: 1, 64>}, {transform_indices = @transform_4, window_bounds = array<i64: 32, 64>}]} {
    %c0 = arith.constant 0 : index
    %c0_0 = arith.constant 0 : index
    %c0_1 = arith.constant 0 : index
    %0 = vector.load %arg2[%c0, %c0_0, %c0_1] : memref<2x64x64xf32, #tpu.memory_space<vmem>>, vector<1x64x64xf32>
    %1 = vector.shape_cast %0 : vector<1x64x64xf32> to vector<64x64xf32>
    %c1 = arith.constant 1 : index
    %c0_2 = arith.constant 0 : index
    %c0_3 = arith.constant 0 : index
    %2 = vector.load %arg2[%c1, %c0_2, %c0_3] : memref<2x64x64xf32, #tpu.memory_space<vmem>>, vector<1x64x64xf32>
    %3 = vector.shape_cast %2 : vector<1x64x64xf32> to vector<64x64xf32>
    %c0_4 = arith.constant 0 : index
    %c0_5 = arith.constant 0 : index
    %c0_6 = arith.constant 0 : index
    %c0_7 = arith.constant 0 : index
    %4 = vector.load %arg1[%c0_4, %c0_5, %c0_6, %c0_7] : memref<4x2x8x64xf32, #tpu.memory_space<vmem>>, vector<4x1x8x64xf32>
    %5 = vector.shape_cast %4 : vector<4x1x8x64xf32> to vector<4x8x64xf32>
    %6 = vector.shape_cast %5 : vector<4x8x64xf32> to vector<32x64xf32>
    %c0_8 = arith.constant 0 : index
    %c1_9 = arith.constant 1 : index
    %c0_10 = arith.constant 0 : index
    %c0_11 = arith.constant 0 : index
    %7 = vector.load %arg1[%c0_8, %c1_9, %c0_10, %c0_11] : memref<4x2x8x64xf32, #tpu.memory_space<vmem>>, vector<4x1x8x64xf32>
    %8 = vector.shape_cast %7 : vector<4x1x8x64xf32> to vector<4x8x64xf32>
    %9 = vector.shape_cast %8 : vector<4x8x64xf32> to vector<32x64xf32>
    %cst = arith.constant dense<0.000000e+00> : vector<32x64xf32>
    %10 = tpu.matmul %6, %1, %cst {dimension_numbers = #tpu.dot_dimension_numbers<[1], [0], [0], [1], [0, 0, 1, 1], [], []>} : vector<32x64xf32>, vector<64x64xf32>, vector<32x64xf32> -> vector<32x64xf32>
    %cst_12 = arith.constant dense<0.000000e+00> : vector<32x64xf32>
    %11 = tpu.matmul %9, %3, %cst_12 {dimension_numbers = #tpu.dot_dimension_numbers<[1], [0], [0], [1], [0, 0, 1, 1], [], []>} : vector<32x64xf32>, vector<64x64xf32>, vector<32x64xf32> -> vector<32x64xf32>
    %12 = arith.addf %10, %11 : vector<32x64xf32>
    %c0_13 = arith.constant 0 : index
    %c0_14 = arith.constant 0 : index
    %13 = vector.load %arg3[%c0_13, %c0_14] : memref<1x64xf32, #tpu.memory_space<vmem>>, vector<1x64xf32>
    %c0_15 = arith.constant 0 : index
    %c0_16 = arith.constant 0 : index
    %14 = vector.load %arg4[%c0_15, %c0_16] : memref<1x64xf32, #tpu.memory_space<vmem>>, vector<1x64xf32>
    %cst_17 = arith.constant dense<0.000000e+00> : vector<32xf32>
    %15 = vector.multi_reduction <add>, %12, %cst_17 [1] : vector<32x64xf32> to vector<32xf32>
    %16 = vector.shape_cast %15 : vector<32xf32> to vector<32x1xf32>
    %17 = arith.mulf %12, %12 : vector<32x64xf32>
    %cst_18 = arith.constant dense<0.000000e+00> : vector<32xf32>
    %18 = vector.multi_reduction <add>, %17, %cst_18 [1] : vector<32x64xf32> to vector<32xf32>
    %19 = vector.shape_cast %18 : vector<32xf32> to vector<32x1xf32>
    %cst_19 = arith.constant 1.562500e-02 : f32
    %20 = vector.broadcast %cst_19 : f32 to vector<32x1xf32>
    %21 = arith.mulf %16, %20 : vector<32x1xf32>
    %cst_20 = arith.constant 1.562500e-02 : f32
    %22 = vector.broadcast %cst_20 : f32 to vector<32x1xf32>
    %23 = arith.mulf %19, %22 : vector<32x1xf32>
    %24 = arith.mulf %21, %21 : vector<32x1xf32>
    %25 = arith.subf %23, %24 : vector<32x1xf32>
    %cst_21 = arith.constant 0.000000e+00 : f32
    %26 = vector.broadcast %cst_21 : f32 to vector<32x1xf32>
    %27 = arith.maximumf %25, %26 : vector<32x1xf32>
    %28 = vector.broadcast %21 : vector<32x1xf32> to vector<32x64xf32>
    %29 = arith.subf %12, %28 : vector<32x64xf32>
    %cst_22 = arith.constant 9.99999974E-6 : f32
    %30 = vector.broadcast %cst_22 : f32 to vector<32x1xf32>
    %31 = arith.addf %27, %30 : vector<32x1xf32>
    %32 = math.rsqrt %31 : vector<32x1xf32>
    %33 = vector.broadcast %32 : vector<32x1xf32> to vector<32x64xf32>
    %34 = arith.mulf %29, %33 : vector<32x64xf32>
    %35 = vector.broadcast %13 : vector<1x64xf32> to vector<32x64xf32>
    %36 = arith.mulf %34, %35 : vector<32x64xf32>
    %37 = vector.broadcast %14 : vector<1x64xf32> to vector<32x64xf32>
    %38 = arith.addf %36, %37 : vector<32x64xf32>
    %c0_23 = arith.constant 0 : index
    %c0_24 = arith.constant 0 : index
    %39 = vector.load %arg5[%c0_23, %c0_24] : memref<32x64xf32, #tpu.memory_space<vmem>>, vector<32x64xf32>
    tpu.vector_store %arg5[%c0_23, %c0_24], %38 {strides = array<i32>} : memref<32x64xf32, #tpu.memory_space<vmem>>, vector<32x64xf32>,
    return
  }
  func.func @transform_0(%arg0: i32) -> (i32, i32, i32, i32) {
    %c0_i32 = arith.constant 0 : i32
    %c0_i32_0 = arith.constant 0 : i32
    %c0_i32_1 = arith.constant 0 : i32
    %c0_i32_2 = arith.constant 0 : i32
    return %arg0, %c0_i32, %c0_i32_0, %c0_i32_1 : i32, i32, i32, i32
  }
  func.func @transform_1(%arg0: i32) -> (i32, i32, i32) {
    %c0_i32 = arith.constant 0 : i32
    %c0_i32_0 = arith.constant 0 : i32
    %c0_i32_1 = arith.constant 0 : i32
    %c0_i32_2 = arith.constant 0 : i32
    return %c0_i32, %c0_i32_0, %c0_i32_1 : i32, i32, i32
  }
  func.func @transform_2(%arg0: i32) -> (i32, i32) {
    %c0_i32 = arith.constant 0 : i32
    %c0_i32_0 = arith.constant 0 : i32
    %c0_i32_1 = arith.constant 0 : i32
    return %c0_i32, %c0_i32_0 : i32, i32
  }
  func.func @transform_3(%arg0: i32) -> (i32, i32) {
    %c0_i32 = arith.constant 0 : i32
    %c0_i32_0 = arith.constant 0 : i32
    %c0_i32_1 = arith.constant 0 : i32
    return %c0_i32, %c0_i32_0 : i32, i32
  }
  func.func @transform_4(%arg0: i32) -> (i32, i32) {
    %c0_i32 = arith.constant 0 : i32
    %c0_i32_0 = arith.constant 0 : i32
    return %arg0, %c0_i32 : i32, i32
  }
}

</mosaic_0001>

<llo_original>
// kernel: patch_merge_forward.1
$region0: #{patch_merge_forward.1}
  #allocation0 [shape = 'u32[]', space=smem, size = 0x4, offset = 0x4, fixed_abs, tag = 'smem constant byte address 0x4 - core index']
  #allocation1 [shape = 'u32[72,128]{1,0:T(1,128)}', space=vmem, size = 0x9000, scoped, tag = 'internal scratch']
  %s0 = inlined_call_operand.vmem [shape: f32[16,2,8,64], index: 0, kind: input, shape index: {}]
  %s1 = inlined_call_operand.vmem [shape: f32[2,64,64], index: 1, kind: input, shape index: {}]
  %s2 = inlined_call_operand.vmem [shape: f32[1,64], index: 2, kind: input, shape index: {}]
  %s3 = inlined_call_operand.vmem [shape: f32[1,64], index: 3, kind: input, shape index: {}]
  %s4 = inlined_call_operand.hbm [shape: f32[128,64], index: 4, kind: output, shape index: {}]
  %s5 = sld [smem:[#allocation0]]
  $region49: #{patch_merge_forward.1} parent=0
    _
  %s7 = ssub.s32 1, %s5
  %s8 = scalar_select 0, %s7, %s5
  $region1: #{patch_merge_forward.1} parent=0
    #allocation2 [shape = 'u8[32768]{0}', space=vmem, size = 0x8000, scoped, tag = 'output window, operand 0']
    #allocation3 [shape = 's32[2]{0}', space=sflag, size = 0x8, scoped, tag = 'scoped memory for patch_merge_forward.1']
    %9 = vsyncpa [#allocation3], 0
    %s10 = scalar_lea.sflag [#allocation3], 1
    %11 = vsyncpa %s10, 0
    loop: start=0, step=1, limit=6
    $region2: #{patch_merge_forward.1} parent=1 // loop_pre_header
      _
    $region3: #{patch_merge_forward.1} parent=1 // loop_header
      %s13 = sphi 0, %s17
      %p14 = scmp.ge.s32.totalorder %s13, 6
      %s23 = sphi 0, %s25
      %s26 = sphi 0, %s23
      %s27 = sphi 0, %s26
      %s43 = sphi 0, %s27
      %s47 = sphi 0, %s47
      %s49 = sphi 0, %s47
      %s50 = sphi 0, %s49
      %s64 = sphi 0, %s50
      %s68 = sphi 0, %s68
      %s70 = sphi 0, %s68
      %s71 = sphi 0, %s70
      %s85 = sphi 0, %s71
      %s89 = sphi 0, %s89
      %s91 = sphi 0, %s89
      %s92 = sphi 0, %s91
      %s106 = sphi 0, %s92
      %s112 = sphi 0, %s114
      %s115 = sphi 0, %s112
      %s116 = sphi 0, %s115
      %s132 = sphi 0, %s116
    $region4: #{patch_merge_forward.1} parent=1 // loop_header_branch
      %16 = sbr.rel (%p14) target = $region8
    $region5: #{patch_merge_forward.1} parent=1 // loop_body
      %s18 = ssub.s32 %s13, 1
      %s19 = ssub.s32 %s13, 2
      %s20 = sadd.s32 %s13, 1
      %s21 = ssub.s32 %s13, %s20
      %p22 = scmp.eq.s32.totalorder %s21, 0
      %s24 = sadd.s32 %s23, 1
      %s25 = scalar_select %p22, %s23, %s24
      %p28 = pneg %p22
      %p29 = scmp.eq.s32.totalorder %s13, 3
      %p30 = por %p28, %p29
      %p31 = scmp.ne.s32.totalorder %s23, %s26
      %p32 = scmp.eq.s32.totalorder %s13, 0
      %p33 = por %p31, %p32
      %p34 = scmp.ne.s32.totalorder %s23, %s26
      %p35 = scmp.eq.s32.totalorder %s18, 3
      %p36 = por %p34, %p35
      %p37 = scmp.ne.s32.totalorder %s26, %s27
      %p38 = scmp.eq.s32.totalorder %s18, 0
      %p39 = por %p37, %p38
      %p40 = scmp.ne.s32.totalorder %s26, %s27
      %p41 = scmp.eq.s32.totalorder %s19, 3
      %p42 = por %p40, %p41
      %p44 = scmp.ne.s32.totalorder %s27, %s43
      %p45 = scmp.eq.s32.totalorder %s19, 0
      %p46 = por %p44, %p45
      %s48 = sadd.s32 %s47, 1
      %p51 = scmp.eq.s32.totalorder %s13, 3
      %p52 = scmp.ne.s32.totalorder %s47, %s49
      %p53 = scmp.eq.s32.totalorder %s13, 0
      %p54 = por %p52, %p53
      %p55 = scmp.ne.s32.totalorder %s47, %s49
      %p56 = scmp.eq.s32.totalorder %s18, 3
      %p57 = por %p55, %p56
      %p58 = scmp.ne.s32.totalorder %s49, %s50
      %p59 = scmp.eq.s32.totalorder %s18, 0
      %p60 = por %p58, %p59
      %p61 = scmp.ne.s32.totalorder %s49, %s50
      %p62 = scmp.eq.s32.totalorder %s19, 3
      %p63 = por %p61, %p62
      %p65 = scmp.ne.s32.totalorder %s50, %s64
      %p66 = scmp.eq.s32.totalorder %s19, 0
      %p67 = por %p65, %p66
      %s69 = sadd.s32 %s68, 1
      %p72 = scmp.eq.s32.totalorder %s13, 3
      %p73 = scmp.ne.s32.totalorder %s68, %s70
      %p74 = scmp.eq.s32.totalorder %s13, 0
      %p75 = por %p73, %p74
      %p76 = scmp.ne.s32.totalorder %s68, %s70
      %p77 = scmp.eq.s32.totalorder %s18, 3
      %p78 = por %p76, %p77
      %p79 = scmp.ne.s32.totalorder %s70, %s71
      %p80 = scmp.eq.s32.totalorder %s18, 0
      %p81 = por %p79, %p80
      %p82 = scmp.ne.s32.totalorder %s70, %s71
      %p83 = scmp.eq.s32.totalorder %s19, 3
      %p84 = por %p82, %p83
      %p86 = scmp.ne.s32.totalorder %s71, %s85
      %p87 = scmp.eq.s32.totalorder %s19, 0
      %p88 = por %p86, %p87
      %s90 = sadd.s32 %s89, 1
      %p93 = scmp.eq.s32.totalorder %s13, 3
      %p94 = scmp.ne.s32.totalorder %s89, %s91
      %p95 = scmp.eq.s32.totalorder %s13, 0
      %p96 = por %p94, %p95
      %p97 = scmp.ne.s32.totalorder %s89, %s91
      %p98 = scmp.eq.s32.totalorder %s18, 3
      %p99 = por %p97, %p98
      %p100 = scmp.ne.s32.totalorder %s91, %s92
      %p101 = scmp.eq.s32.totalorder %s18, 0
      %p102 = por %p100, %p101
      %p103 = scmp.ne.s32.totalorder %s91, %s92
      %p104 = scmp.eq.s32.totalorder %s19, 3
      %p105 = por %p103, %p104
      %p107 = scmp.ne.s32.totalorder %s92, %s106
      %p108 = scmp.eq.s32.totalorder %s19, 0
      %p109 = por %p107, %p108
      %s110 = ssub.s32 %s13, %s20
      %p111 = scmp.eq.s32.totalorder %s110, 0
      %s113 = sadd.s32 %s112, 1
      %s114 = scalar_select %p111, %s112, %s113
      %p117 = pneg %p111
      %p118 = scmp.eq.s32.totalorder %s13, 3
      %p119 = por %p117, %p118
      %p120 = scmp.ne.s32.totalorder %s112, %s115
      %p121 = scmp.eq.s32.totalorder %s13, 0
      %p122 = por %p120, %p121
      %p123 = scmp.ne.s32.totalorder %s112, %s115
      %p124 = scmp.eq.s32.totalorder %s18, 3
      %p125 = por %p123, %p124
      %p126 = scmp.ne.s32.totalorder %s115, %s116
      %p127 = scmp.eq.s32.totalorder %s18, 0
      %p128 = por %p126, %p127
      %p129 = scmp.ne.s32.totalorder %s115, %s116
      %p130 = scmp.eq.s32.totalorder %s19, 3
      %p131 = por %p129, %p130
      %p133 = scmp.ne.s32.totalorder %s116, %s132
      %p134 = scmp.eq.s32.totalorder %s19, 0
      %p135 = por %p133, %p134
      %p136 = scmp.le.s32.totalorder 1, %s13
      %p137 = scmp.lt.s32.totalorder %s13, 5
      %p138 = pnand %p136, %p137
      %p139 = pneg %p138
      // Predicated region
      $region9: #{patch_merge_forward.1} parent=5 // pred_check
        _
      $region10: #{patch_merge_forward.1} parent=5 // pred_check_branch
        %141 = sbr.rel (%p138) target = $region12
      $region11: #{patch_merge_forward.1} parent=5 // pred_region
        %s142 = ssub.s32 %s13, 1
        // Predicated region
        $region13: #{patch_merge_forward.1} parent=11 // pred_check
          %p143 = pneg %p60
        $region14: #{patch_merge_forward.1} parent=11 // pred_check_branch
          %145 = sbr.rel (%p143) target = $region16
        $region15: #{patch_merge_forward.1} parent=11 // pred_region
          _
        $region16: #{patch_merge_forward.1} parent=11 // pred_fallthru
          _
        // Predicated region
        $region17: #{patch_merge_forward.1} parent=11 // pred_check
          %p146 = pneg %p81
        $region18: #{patch_merge_forward.1} parent=11 // pred_check_branch
          %148 = sbr.rel (%p146) target = $region20
        $region19: #{patch_merge_forward.1} parent=11 // pred_region
          _
        $region20: #{patch_merge_forward.1} parent=11 // pred_fallthru
          _
        // Predicated region
        $region21: #{patch_merge_forward.1} parent=11 // pred_check
          %p149 = pneg %p102
        $region22: #{patch_merge_forward.1} parent=11 // pred_check_branch
          %151 = sbr.rel (%p149) target = $region24
        $region23: #{patch_merge_forward.1} parent=11 // pred_region
          _
        $region24: #{patch_merge_forward.1} parent=11 // pred_fallthru
          _
      $region12: #{patch_merge_forward.1} parent=5 // pred_fallthru
        _
      %p152 = scmp.lt.s32.totalorder %s13, 4
      // Predicated region
      $region25: #{patch_merge_forward.1} parent=5 // pred_check
        %p153 = pneg %p152
      $region26: #{patch_merge_forward.1} parent=5 // pred_check_branch
        %155 = sbr.rel (%p153) target = $region28
      $region27: #{patch_merge_forward.1} parent=5 // pred_region
        // Predicated region
        $region29: #{patch_merge_forward.1} parent=27 // pred_check
          %p156 = pneg %p33
        $region30: #{patch_merge_forward.1} parent=27 // pred_check_branch
          %158 = sbr.rel (%p156) target = $region32
        $region31: #{patch_merge_forward.1} parent=27 // pred_region
          %s159 = smul.u32 4, %s13
          %p160 = scmp.lt.s32.totalorder %s159, 15
          %s161 = scalar_select %p160, %s159, 15
          %s162 = smul.addr %s161, 2
          %s163 = smul.addr %s162, 8
          %s164 = scalar_lea.vmem %s0, %s163
          %s165 = smul.u32 4, %s13
        $region32: #{patch_merge_forward.1} parent=27 // pred_fallthru
          _
      $region28: #{patch_merge_forward.1} parent=5 // pred_fallthru
        _
      %p166 = scmp.le.s32.totalorder 1, %s13
      %p167 = scmp.lt.s32.totalorder %s13, 5
      %p168 = pnand %p166, %p167
      %p169 = pneg %p168
      // Predicated region
      $region33: #{patch_merge_forward.1} parent=5 // pred_check
        _
      $region34: #{patch_merge_forward.1} parent=5 // pred_check_branch
        %171 = sbr.rel (%p168) target = $region36
      $region35: #{patch_merge_forward.1} parent=5 // pred_region
        %s172 = ssub.s32 %s13, 1
        %s173 = smul.u32 4, %s18
        %p174 = scmp.lt.s32.totalorder %s173, 15
        %s175 = scalar_select %p174, %s173, 15
        %s176 = smul.addr %s175, 2
        %s177 = smul.addr %s176, 8
        %s178 = scalar_lea.vmem %s0, %s177
        %p179 = pneg %p39
        %p180 = pneg %p36
        %p181 = pneg %p60
        %p182 = pneg %p57
        %p183 = pneg %p81
        %p184 = pneg %p78
        %p185 = pneg %p102
        %p186 = pneg %p99
        %p187 = pneg %p128
        %p188 = pneg %p125
        %s189 = sand.u32 %s115, 1
        %s190 = scalar_lea.sflag [#allocation3], %s189
        %s191 = sand.u32 %s115, 1
        %s192 = smul.addr %s191, 32
        %s193 = scalar_lea.vmem [#allocation2], %s192
        %s194 = smul.u32 4, %s18
        %p195 = scmp.lt.s32.totalorder %s194, 15
        %s196 = scalar_select %p195, %s194, 15
        %s197 = smul.addr %s196, 2
        %s198 = smul.addr %s197, 8
        %s199 = scalar_lea.vmem %s0, %s198
        %s200 = smul.u32 4, %s18
        %s201 = smul.u32 4, %s18
        %v202 = vld [vmem:[%s1] sm:$0xff]
        %v203 = vld [vmem:[%s1 + $0x8] sm:$0xff]
        %v204 = vld [vmem:[%s1 + $0x10] sm:$0xff]
        %v205 = vld [vmem:[%s1 + $0x18] sm:$0xff]
        %v206 = vld [vmem:[%s1 + $0x20] sm:$0xff]
        %v207 = vld [vmem:[%s1 + $0x28] sm:$0xff]
        %v208 = vld [vmem:[%s1 + $0x30] sm:$0xff]
        %v209 = vld [vmem:[%s1 + $0x38] sm:$0xff]
        %s210 = scalar_lea.vmem %s1, 64
        %v211 = vld [vmem:[%s210] sm:$0xff]
        %v212 = vld [vmem:[%s210 + $0x8] sm:$0xff]
        %v213 = vld [vmem:[%s210 + $0x10] sm:$0xff]
        %v214 = vld [vmem:[%s210 + $0x18] sm:$0xff]
        %v215 = vld [vmem:[%s210 + $0x20] sm:$0xff]
        %v216 = vld [vmem:[%s210 + $0x28] sm:$0xff]
        %v217 = vld [vmem:[%s210 + $0x30] sm:$0xff]
        %v218 = vld [vmem:[%s210 + $0x38] sm:$0xff]
        %v219 = vld [vmem:[%s199] sm:$0xff]
        %v220 = vld [vmem:[%s199 + $0x10] sm:$0xff]
        %v221 = vld [vmem:[%s199 + $0x20] sm:$0xff]
        %v222 = vld [vmem:[%s199 + $0x30] sm:$0xff]
        %s223 = scalar_lea.vmem %s199, 8
        %v224 = vld [vmem:[%s223] sm:$0xff]
        %v225 = vld [vmem:[%s223 + $0x10] sm:$0xff]
        %v226 = vld [vmem:[%s223 + $0x20] sm:$0xff]
        %v227 = vld [vmem:[%s223 + $0x30] sm:$0xff]
        %vm228 = vcmask 523264
        %v230 = vsel %vm228, %v224, 0
        %v233 = vsel %vm228, %v225, 0
        %v236 = vsel %vm228, %v226, 0
        %v239 = vsel %vm228, %v227, 0
        %241 = vmatpush.msra.mxu0 0.0
        %242 = vmatpush.msra.mxu0 0.0
        %243 = vmatpush.msra.mxu0 0.0
        %244 = vmatpush.msra.mxu0 0.0
        %245 = vmatpush.msra.mxu0 0.0
        %246 = vmatpush.msra.mxu0 0.0
        %247 = vmatpush.msra.mxu0 0.0
        %248 = vmatpush.msra.mxu0 0.0
        %249 = vmatpush.msra.mxu0 %v218
        %250 = vmatpush.msra.mxu0 %v217
        %251 = vmatpush.msra.mxu0 %v216
        %252 = vmatpush.msra.mxu0 %v215
        %253 = vmatpush.msra.mxu0 %v214
        %254 = vmatpush.msra.mxu0 %v213
        %255 = vmatpush.msra.mxu0 %v212
        %256 = vmatpush.msra.mxu0 %v211
        %257 = vmatmul.f32.gmra.mxu0 %v230
        %v258 = vpop.f32.mrf.mxu0
        %v259 = vadd.f32 0.0, %v258
        %260 = vmatmul.f32.gmra.mxu0 %v233
        %v261 = vpop.f32.mrf.mxu0
        %v262 = vadd.f32 0.0, %v261
        %263 = vmatmul.f32.gmra.mxu0 %v236
        %v264 = vpop.f32.mrf.mxu0
        %v265 = vadd.f32 0.0, %v264
        %266 = vmatmul.f32.gmra.mxu0 %v239
        %v267 = vpop.f32.mrf.mxu0
        %v268 = vadd.f32 0.0, %v267
        %269 = vdwg.mxu0
        %v271 = vsel %vm228, %v219, 0
        %v274 = vsel %vm228, %v220, 0
        %v277 = vsel %vm228, %v221, 0
        %v280 = vsel %vm228, %v222, 0
        %282 = vmatpush.msra.mxu0 0.0
        %283 = vmatpush.msra.mxu0 0.0
        %284 = vmatpush.msra.mxu0 0.0
        %285 = vmatpush.msra.mxu0 0.0
        %286 = vmatpush.msra.mxu0 0.0
        %287 = vmatpush.msra.mxu0 0.0
        %288 = vmatpush.msra.mxu0 0.0
        %289 = vmatpush.msra.mxu0 0.0
        %290 = vmatpush.msra.mxu0 %v209
        %291 = vmatpush.msra.mxu0 %v208
        %292 = vmatpush.msra.mxu0 %v207
        %293 = vmatpush.msra.mxu0 %v206
        %294 = vmatpush.msra.mxu0 %v205
        %295 = vmatpush.msra.mxu0 %v204
        %296 = vmatpush.msra.mxu0 %v203
        %297 = vmatpush.msra.mxu0 %v202
        %298 = vmatmul.f32.gmra.mxu0 %v271
        %v299 = vpop.f32.mrf.mxu0
        %v300 = vadd.f32 %v259, %v299
        %301 = vmatmul.f32.gmra.mxu0 %v274
        %v302 = vpop.f32.mrf.mxu0
        %v303 = vadd.f32 %v262, %v302
        %304 = vmatmul.f32.gmra.mxu0 %v277
        %v305 = vpop.f32.mrf.mxu0
        %v306 = vadd.f32 %v265, %v305
        %307 = vmatmul.f32.gmra.mxu0 %v280
        %v308 = vpop.f32.mrf.mxu0
        %v309 = vadd.f32 %v268, %v308
        %310 = vdwg.mxu0
        %v311 = vld [vmem:[%s2] sm:$0x1]
        %v312 = vld [vmem:[%s3] sm:$0x1]
        %v313 = vsel %vm228, %v300, 0.0
        %314 = vadd.xlane.f32.xlu0 %v313
        %v315 = vpop.xlane.xlu0 %314
        %v316 = vsel %vm228, %v303, 0.0
        %317 = vadd.xlane.f32.xlu0 %v316
        %v318 = vpop.xlane.xlu0 %317
        %v319 = vsel %vm228, %v306, 0.0
        %320 = vadd.xlane.f32.xlu0 %v319
        %v321 = vpop.xlane.xlu0 %320
        %v322 = vsel %vm228, %v309, 0.0
        %323 = vadd.xlane.f32.xlu0 %v322
        %v324 = vpop.xlane.xlu0 %323
        %v325 = vmul.f32 %v300, %v300
        %v326 = vmul.f32 %v303, %v303
        %v327 = vmul.f32 %v306, %v306
        %v328 = vmul.f32 %v309, %v309
        %v329 = vsel %vm228, %v325, 0.0
        %330 = vadd.xlane.f32.xlu0 %v329
        %v331 = vpop.xlane.xlu0 %330
        %v332 = vsel %vm228, %v326, 0.0
        %333 = vadd.xlane.f32.xlu0 %v332
        %v334 = vpop.xlane.xlu0 %333
        %v335 = vsel %vm228, %v327, 0.0
        %336 = vadd.xlane.f32.xlu0 %v335
        %v337 = vpop.xlane.xlu0 %336
        %v338 = vsel %vm228, %v328, 0.0
        %339 = vadd.xlane.f32.xlu0 %v338
        %v340 = vpop.xlane.xlu0 %339
        %v341 = vmul.f32 %v315, 0.015625
        %v342 = vmul.f32 %v318, 0.015625
        %v343 = vmul.f32 %v321, 0.015625
        %v344 = vmul.f32 %v324, 0.015625
        %v345 = vmul.f32 %v331, 0.015625
        %v346 = vmul.f32 %v334, 0.015625
        %v347 = vmul.f32 %v337, 0.015625
        %v348 = vmul.f32 %v340, 0.015625
        %v349 = vmul.f32 %v341, %v341
        %v350 = vmul.f32 %v342, %v342
        %v351 = vmul.f32 %v343, %v343
        %v352 = vmul.f32 %v344, %v344
        %v353 = vsub.f32 %v345, %v349
        %v354 = vsub.f32 %v346, %v350
        %v355 = vsub.f32 %v347, %v351
        %v356 = vsub.f32 %v348, %v352
        %v357 = vmax.f32 %v353, 0.0
        %v358 = vmax.f32 %v354, 0.0
        %v359 = vmax.f32 %v355, 0.0
        %v360 = vmax.f32 %v356, 0.0
        %v361 = vsub.f32 %v300, %v341
        %v362 = vsub.f32 %v303, %v342
        %v363 = vsub.f32 %v306, %v343
        %v364 = vsub.f32 %v309, %v344
        %v365 = vadd.f32 %v357, 1e-05
        %v366 = vadd.f32 %v358, 1e-05
        %v367 = vadd.f32 %v359, 1e-05
        %v368 = vadd.f32 %v360, 1e-05
        %v369 = vrsqrt.pop %v365
        %v370 = vmul.f32 %v369, %v365
        %v371 = vmul.f32 %v370, %v369
        %v372 = vmul.f32 0.5, %v371
        %v373 = vsub.f32 1.5, %v372
        %v374 = vmul.f32 %v369, %v373
        %vm375 = vweird.f32 %v365
        %vm376 = vweird.f32 %v369
        %vm377 = vmor %vm375, %vm376
        %v378 = vsel %vm377, %v369, %v374
        %v379 = vrsqrt.pop %v366
        %v380 = vmul.f32 %v379, %v366
        %v381 = vmul.f32 %v380, %v379
        %v382 = vmul.f32 0.5, %v381
        %v383 = vsub.f32 1.5, %v382
        %v384 = vmul.f32 %v379, %v383
        %vm385 = vweird.f32 %v366
        %vm386 = vweird.f32 %v379
        %vm387 = vmor %vm385, %vm386
        %v388 = vsel %vm387, %v379, %v384
        %v389 = vrsqrt.pop %v367
        %v390 = vmul.f32 %v389, %v367
        %v391 = vmul.f32 %v390, %v389
        %v392 = vmul.f32 0.5, %v391
        %v393 = vsub.f32 1.5, %v392
        %v394 = vmul.f32 %v389, %v393
        %vm395 = vweird.f32 %v367
        %vm396 = vweird.f32 %v389
        %vm397 = vmor %vm395, %vm396
        %v398 = vsel %vm397, %v389, %v394
        %v399 = vrsqrt.pop %v368
        %v400 = vmul.f32 %v399, %v368
        %v401 = vmul.f32 %v400, %v399
        %v402 = vmul.f32 0.5, %v401
        %v403 = vsub.f32 1.5, %v402
        %v404 = vmul.f32 %v399, %v403
        %vm405 = vweird.f32 %v368
        %vm406 = vweird.f32 %v399
        %vm407 = vmor %vm405, %vm406
        %v408 = vsel %vm407, %v399, %v404
        %v409 = vmul.f32 %v361, %v378
        %v410 = vmul.f32 %v362, %v388
        %v411 = vmul.f32 %v363, %v398
        %v412 = vmul.f32 %v364, %v408
        %v414 = vperm.slane %v311, 0
        %v416 = vmul.f32 %v409, %v414
        %v417 = vmul.f32 %v410, %v414
        %v418 = vmul.f32 %v411, %v414
        %v419 = vmul.f32 %v412, %v414
        %v421 = vperm.slane %v312, 0
        %v423 = vadd.f32 %v416, %v421
        %v424 = vadd.f32 %v417, %v421
        %v425 = vadd.f32 %v418, %v421
        %v426 = vadd.f32 %v419, %v421
        %427 = vst.msk [vmem:[%s193] sm:$0xff] %vm228, %v423
        %428 = vst.msk [vmem:[%s193 + $0x8] sm:$0xff] %vm228, %v424
        %429 = vst.msk [vmem:[%s193 + $0x10] sm:$0xff] %vm228, %v425
        %430 = vst.msk [vmem:[%s193 + $0x18] sm:$0xff] %vm228, %v426
        %s431 = sand.u32 %s115, 1
        %s432 = scalar_lea.sflag [#allocation3], %s431
        %s433 = sand.u32 %s115, 1
        %s434 = smul.addr %s433, 32
        %s435 = scalar_lea.vmem [#allocation2], %s434
        // Predicated region
        $region37: #{patch_merge_forward.1} parent=35 // pred_check
          %p436 = pneg %p125
        $region38: #{patch_merge_forward.1} parent=35 // pred_check_branch
          %438 = sbr.rel (%p436) target = $region40
        $region39: #{patch_merge_forward.1} parent=35 // pred_region
          %s439 = smul.u32 4, %s18
          %441 = vsyncadd %s432, 0
          %s442 = smul.addr %s439, 8
          %s443 = scalar_lea.hbm %s4, %s442
          %s444 = sshll.u32 %s435, 4
          %s445 = int_to_ptr.vmem [resolvable:$true] %s444
          %s446 = sshll.u32 %s443, 4
          %s447 = int_to_ptr.hbm [resolvable:$true] %s446
          %452 = dma.vmem_to_hbm [thread:$0]  %s445, 512, %s447, %s432, 128, 128, 8
        $region40: #{patch_merge_forward.1} parent=35 // pred_fallthru
          _
      $region36: #{patch_merge_forward.1} parent=5 // pred_fallthru
        _
      %p453 = scmp.le.s32.totalorder 2, %s13
      // Predicated region
      $region41: #{patch_merge_forward.1} parent=5 // pred_check
        %p454 = pneg %p453
      $region42: #{patch_merge_forward.1} parent=5 // pred_check_branch
        %456 = sbr.rel (%p454) target = $region44
      $region43: #{patch_merge_forward.1} parent=5 // pred_region
        %s457 = ssub.s32 %s13, 2
        // Predicated region
        $region45: #{patch_merge_forward.1} parent=43 // pred_check
          %p458 = pneg %p131
        $region46: #{patch_merge_forward.1} parent=43 // pred_check_branch
          %460 = sbr.rel (%p458) target = $region48
        $region47: #{patch_merge_forward.1} parent=43 // pred_region
          %s461 = sand.u32 %s116, 1
          %s462 = scalar_lea.sflag [#allocation3], %s461
          %s463 = sand.u32 %s116, 1
          %s464 = smul.addr %s463, 32
          %s465 = scalar_lea.vmem [#allocation2], %s464
          %467 = dma.done %s462, 512
        $region48: #{patch_merge_forward.1} parent=43 // pred_fallthru
          _
      $region44: #{patch_merge_forward.1} parent=5 // pred_fallthru
        _
    $region6: #{patch_merge_forward.1} parent=1 // loop_footer
      %s17 = sadd.s32 1, %s13
    $region7: #{patch_merge_forward.1} parent=1 // loop_footer_branch
      %12 = sbr.rel target = $region3
    $region8: #{patch_merge_forward.1} parent=1 // loop_exit
      _
    %468 = vsyncpa [#allocation3], 1
    %s469 = scalar_lea.sflag [#allocation3], 1
    %470 = vsyncpa %s469, 1

</llo_original>
